<compile_context>
chip_gen: v6e
topology: v6e:2x2x1
jax: 0.10.0
libtpu: 0.0.40
codegen_flags: <defaults>
</compile_context>

<pallas_src>
import functools

import jax
import jax.numpy as jnp
from jax.experimental import pallas as pl
from jax.experimental.pallas import tpu as pltpu


_SUBLANE = 8
# Per-pipeline-buffer target for the DMA-path output block (x2 double
# buffering stays far below every generation's default scoped-VMEM limit).
_TARGET_OUT_BLOCK_BYTES = 4 * 1024 * 1024
# Contiguous-fallback budget (input block of tile_t*factor rows + output
# block, both double-buffered).
_CONTIG_VMEM_BUDGET_BYTES = 12 * 1024 * 1024
# One HBM burst.  Strided reads win as soon as the span skipped between two
# kept frames covers a burst: frame_bytes * factor >= burst.
_HBM_BURST_BYTES = 512
# Cap on utterances copied per grid step (overhead amortization; diminishing
# returns beyond this).
_MAX_B_BLK = 8


def _round_tile_t(tile, t_out):
    """Clamp to t_out; otherwise keep it a multiple of 8 (sublane rule)."""
    tile = min(int(tile), t_out)
    if tile >= t_out:
        return t_out
    return max(_SUBLANE, (tile // _SUBLANE) * _SUBLANE)


def _choose_dma_tiling(batch, t_out, d, itemsize):
    """Pick (tile_t, b_blk) for the strided-DMA path."""
    row_bytes = d * itemsize
    rows_budget = max(_SUBLANE, _TARGET_OUT_BLOCK_BYTES // max(row_bytes, 1))
    tile_t = _round_tile_t(min(rows_budget, 2048), t_out)
    b_blk = max(1, min(batch, _MAX_B_BLK, rows_budget // max(tile_t, 1)))
    # v7x has 2 TensorCores per chip: make sure a B==1 / short-input case
    # still yields >= 2 grid steps so both cores get work (neutral on v5e/v6e,
    # which have a single TC).
    n_t = -(-t_out // tile_t)
    n_b = -(-batch // b_blk)
    if n_b * n_t < 2:
        if batch >= 2:
            b_blk = -(-batch // 2)                      # -> n_b >= 2
        elif t_out >= 2 * _SUBLANE:
            tile_t = max(_SUBLANE, ((t_out // 2) // _SUBLANE) * _SUBLANE)
    return tile_t, b_blk


def _choose_contig_tile_t(t_out, factor, d, itemsize):
    """Output-time tile for the contiguous fallback path."""
    bytes_per_out_row = d * itemsize * 2 * (1 + factor)  # out + in blocks, 2 bufs
    tile = _CONTIG_VMEM_BUDGET_BYTES // max(bytes_per_out_row, 1)
    return _round_tile_t(min(tile, 2048), t_out)


def _drop_slice_kernel(factor, tile_t, x_ref, ys_ref):
    """Contiguous-fetch fallback: x_ref (1, Tin, D) in VMEM; keep every factor-th row.

    NOTE: with D < 128 the stores are masked (lane-sparse); pad/pack D to a
    multiple of 128 upstream if this path ever matters.
    """
    # TODO(synk): for packed bf16/int8 narrow-frame inputs the strided in-VMEM
    # read incurs sublane repacking; bitcasting frame pairs to 32-bit
    # containers would avoid it.
    ys_ref[...] = x_ref[:, pl.ds(0, tile_t, stride=factor), :]


def _drop_dma_kernel(factor, tile_t, tail_t, b_blk, batch, x_hbm, ys_ref, sems):
    """Strided-HBM-DMA path: fetch only the kept frames of b_blk utterances,
    straight into the output VMEM block (DMA-only copy, no vld/vst)."""
    bi = pl.program_id(0)
    ti = pl.program_id(1)
    src_t0 = ti * (tile_t * factor)
    # Only the last batch block can hang off the end of the array; those
    # utterances' DMAs must be skipped (an OOB HBM read would trip the DMA
    # bounds check).  Their output rows are clipped on writeback (edge block).
    need_b_guard = (batch % b_blk) != 0

    def copy(j, n_rows):
        return pltpu.make_async_copy(
            x_hbm.at[bi * b_blk + j, pl.ds(src_t0, n_rows, stride=factor), :],
            ys_ref.at[j, pl.ds(0, n_rows), :],
            sems.at[j],
        )

    def issue_all(n_rows):
        # Start all b_blk strided copies before waiting on any of them so the
        # DMA issue/descriptor latencies overlap.
        for j in range(b_blk):
            if need_b_guard:
                @pl.when(bi * b_blk + j < batch)
                def _(j=j):
                    copy(j, n_rows).start()
            else:
                copy(j, n_rows).start()
        for j in range(b_blk):
            if need_b_guard:
                @pl.when(bi * b_blk + j < batch)
                def _(j=j):
                    copy(j, n_rows).wait()
            else:
                copy(j, n_rows).wait()

    if tail_t == tile_t:
        # All time tiles are full; no branching.
        issue_all(tile_t)
    else:
        is_tail = ti == pl.num_programs(1) - 1

        @pl.when(jnp.logical_not(is_tail))
        def _():
            issue_all(tile_t)

        @pl.when(is_tail)
        def _():
            # Static tail size keeps the strided source DMA in bounds
            # (src_t0 + (tail_t-1)*factor <= T-1).  Output rows >= tail_t of
            # this block are deliberately left stale in VMEM and are never
            # written back: Pallas clips out-of-bounds rows of the edge output
            # block.  Do NOT change out_specs in a way that removes this
            # clipping.
            issue_all(tail_t)


def drop_subsampler(xs, xlens, factor, *, tile_t=None, b_blk=None):
    """Pallas equivalent of DropSubsampler.forward(xs, xlens).

    xs: (B, T, D); xlens: (B,) int.  Frames beyond xlens[b] pass through
    unchanged (garbage padding), matching the PyTorch reference semantics;
    downstream consumers must mask by ylens.
    """
    if factor == 1:
        return xs, xlens.astype(jnp.int32)

    B, T, D = xs.shape
    t_out = -(-T // factor)  # == len(range(0, T, factor))

    # Length update hoisted out of the kernel (trivial, XLA fuses it).
    ylens = jnp.maximum(1, (xlens.astype(jnp.int32) + factor - 1) // factor)

    itemsize = jnp.dtype(xs.dtype).itemsize
    frame_bytes = D * itemsize
    # Factor-aware routing: strided reads only waste HBM bursts while the
    # skipped span (factor * frame_bytes) is below one burst.
    use_strided_dma = frame_bytes * factor >= _HBM_BURST_BYTES

    out_shape = jax.ShapeDtypeStruct((B, t_out, D), xs.dtype)
    cparams = pltpu.CompilerParams(
        dimension_semantics=("parallel", "parallel"),
    )

    if use_strided_dma:
        auto_tile, auto_bblk = _choose_dma_tiling(B, t_out, D, itemsize)
        tile_t = auto_tile if tile_t is None else _round_tile_t(tile_t, t_out)
        b_blk = auto_bblk if b_blk is None else max(1, min(int(b_blk), B))
        n_t = pl.cdiv(t_out, tile_t)
        n_b = pl.cdiv(B, b_blk)
        tail_t = t_out - (n_t - 1) * tile_t
        kernel = functools.partial(
            _drop_dma_kernel, factor, tile_t, tail_t, b_blk, B)
        ys = pl.pallas_call(
            kernel,
            out_shape=out_shape,
            grid=(n_b, n_t),
            in_specs=[pl.BlockSpec(memory_space=pl.ANY)],      # raw HBM ref
            out_specs=pl.BlockSpec((b_blk, tile_t, D),
                                   lambda bi, ti: (bi, ti, 0)),
            scratch_shapes=[pltpu.SemaphoreType.DMA((b_blk,))],
            compiler_params=cparams,
        )(xs)
    else:
        if tile_t is None:
            tile_t = _choose_contig_tile_t(t_out, factor, D, itemsize)
        else:
            tile_t = _round_tile_t(tile_t, t_out)
        n_t = pl.cdiv(t_out, tile_t)
        # Single time tile uses the full (1, T, D) block (T need not be /8);
        # multi-tile uses (1, tile_t*factor, D) with tile_t a multiple of 8.
        in_t_block = T if n_t == 1 else tile_t * factor
        kernel = functools.partial(_drop_slice_kernel, factor, tile_t)
        ys = pl.pallas_call(
            kernel,
            out_shape=out_shape,
            grid=(B, n_t),
            in_specs=[pl.BlockSpec((1, in_t_block, D),
                                   lambda b, ti: (b, ti, 0))],
            out_specs=pl.BlockSpec((1, tile_t, D), lambda b, ti: (b, ti, 0)),
            compiler_params=cparams,
        )(xs)

    return ys, ylens


def _reference(xs, xlens, factor):
    if factor == 1:
        return xs, xlens.astype(jnp.int32)
    ys = xs[:, ::factor, :]
    yl = jnp.maximum(1, (xlens.astype(jnp.int32) + factor - 1) // factor)
    return ys, yl


if __name__ == "__main__":
    key = jax.random.PRNGKey(0)
    keys = jax.random.split(key, 6)

    cases = [
        # (shape, xlens, factor, dtype, tile_t, b_blk)
        # 1) tiny narrow frames, low factor -> contiguous fallback, single tile
        ((2, 16, 32), [16, 11], 2, jnp.float32, None, None),
        # 2) narrow contiguous fallback, multiple time tiles + edge block
        ((2, 67, 32), [67, 5], 3, jnp.float32, 8, None),
        # 3) typical speech features -> strided-DMA path (factor-aware routing),
        #    ragged time tail + ragged batch tail (B=3, b_blk=2 -> guard path)
        ((3, 67, 80), [67, 40, 13], 4, jnp.float32, 8, 2),
        # 4) wide frames -> strided-DMA path, 3 time tiles, batch divides evenly
        ((2, 67, 128), [67, 40], 3, jnp.float32, 8, 2),
        # 5) auto tiling: single time tile per utterance, utterances batched per
        #    step, v7x >=2-step guardrail exercised
        ((4, 200, 80), [200, 150, 99, 17], 2, jnp.float32, None, None),
        # 6) bf16 on the strided-DMA path
        ((2, 50, 80), [50, 33], 4, jnp.bfloat16, None, None),
    ]

    for i, (shape, xlens_list, factor, dtype, tile_t, b_blk) in enumerate(cases):
        xs = jax.random.normal(keys[i], shape, dtype=jnp.float32).astype(dtype)
        xlens = jnp.array(xlens_list, jnp.int32)

        ys, ylens = drop_subsampler(xs, xlens, factor, tile_t=tile_t, b_blk=b_blk)
        ys = jax.block_until_ready(ys)
        ylens = jax.block_until_ready(ylens)

        ref_ys, ref_ylens = _reference(xs, xlens, factor)
        assert ys.shape == ref_ys.shape and ys.dtype == ref_ys.dtype, (
            f"shape/dtype mismatch for case {i}")
        assert jnp.array_equal(ys, ref_ys), (
            f"frame-drop mismatch for case {i}: {shape}, factor={factor}")
        assert jnp.array_equal(ylens, ref_ylens), (
            f"length mismatch for case {i}: {shape}, factor={factor}")

    # factor == 1 passthrough
    xs = jax.random.normal(keys[0], (2, 16, 32), dtype=jnp.float32)
    xlens = jnp.array([16, 11], jnp.int32)
    ys, ylens = drop_subsampler(xs, xlens, 1)
    assert jnp.array_equal(jax.block_until_ready(ys), xs)
    assert jnp.array_equal(jax.block_until_ready(ylens), xlens)

    print("KERNEL_OK")
</pallas_src>

<mosaic_0001>
module attributes {stable_mosaic.version = 11 : i64} {
  func.func @_drop_slice_kernel(%arg0: i32, %arg1: i32, %arg2: memref<1x16x32xf32, #tpu.memory_space<vmem>>, %arg3: memref<1x8x32xf32, #tpu.memory_space<vmem>>) attributes {dimension_semantics = [#tpu.dimension_semantics<parallel>, #tpu.dimension_semantics<parallel>], iteration_bounds = array<i64: 2, 1>, scalar_prefetch = 0 : i64, scratch_operands = 0 : i64, tpu.core_type = #tpu.core_type<tc>, window_params = [{transform_indices = @transform_0, window_bounds = array<i64: 1, 16, 32>}, {transform_indices = @transform_1, window_bounds = array<i64: 1, 8, 32>}]} {
    %c0 = arith.constant 0 : index
    %c0_0 = arith.constant 0 : index
    %c0_1 = arith.constant 0 : index
    %0 = tpu.strided_load %arg2[%c0, %c0_0, %c0_1] {strides = array<i32: 1, 2, 1>} : memref<1x16x32xf32, #tpu.memory_space<vmem>>, vector<1x8x32xf32>
    %c0_2 = arith.constant 0 : index
    %c0_3 = arith.constant 0 : index
    %c0_4 = arith.constant 0 : index
    %1 = vector.load %arg3[%c0_2, %c0_3, %c0_4] : memref<1x8x32xf32, #tpu.memory_space<vmem>>, vector<1x8x32xf32>
    tpu.vector_store %arg3[%c0_2, %c0_3, %c0_4], %0 {strides = array<i32>} : memref<1x8x32xf32, #tpu.memory_space<vmem>>, vector<1x8x32xf32>,
    return
  }
  func.func @transform_0(%arg0: i32, %arg1: i32) -> (i32, i32, i32) {
    %c0_i32 = arith.constant 0 : i32
    %c0_i32_0 = arith.constant 0 : i32
    return %arg0, %arg1, %c0_i32 : i32, i32, i32
  }
  func.func @transform_1(%arg0: i32, %arg1: i32) -> (i32, i32, i32) {
    %c0_i32 = arith.constant 0 : i32
    %c0_i32_0 = arith.constant 0 : i32
    return %arg0, %arg1, %c0_i32 : i32, i32, i32
  }
}

</mosaic_0001>

<llo_original>
// kernel: tpu_custom_call.1
$region0: #{tpu_custom_call.1}
  #allocation0 [shape = 'u32[]', space=smem, size = 0x4, offset = 0x4, fixed_abs, tag = 'smem constant byte address 0x4 - core index']
  #allocation1 [shape = 'u32[144,128]{1,0:T(1,128)}', space=vmem, size = 0x12000, scoped, tag = 'internal scratch']
  %s0 = inlined_call_operand.hbm [shape: f32[2,16,32], index: 0, kind: input, shape index: {}]
  %s1 = inlined_call_operand.hbm [shape: f32[2,8,32], index: 1, kind: output, shape index: {}]
  %s2 = sld [smem:[#allocation0]]
  $region41: #{tpu_custom_call.1} parent=0
    _
  %s4 = ssub.s32 1, %s2
  %s5 = scalar_select 0, %s4, %s2
  $region1: #{tpu_custom_call.1} parent=0
    #allocation2 [shape = 'u8[16384]{0}', space=vmem, size = 0x4000, scoped, tag = 'input window, operand 0']
    #allocation3 [shape = 's32[2]{0}', space=sflag, size = 0x8, scoped, tag = 'scoped memory for tpu_custom_call.1']
    #allocation4 [shape = 's32[2]{0}', space=sflag, size = 0x8, scoped, tag = 'scoped memory for tpu_custom_call.1']
    #allocation5 [shape = 'u8[8192]{0}', space=vmem, size = 0x2000, scoped, tag = 'output window, operand 0']
    %6 = vsyncpa [#allocation3], 0
    %s7 = scalar_lea.sflag [#allocation3], 1
    %8 = vsyncpa %s7, 0
    %9 = vsyncpa [#allocation4], 0
    %s10 = scalar_lea.sflag [#allocation4], 1
    %11 = vsyncpa %s10, 0
    loop: start=0, step=1, limit=4
    $region2: #{tpu_custom_call.1} parent=1 // loop_pre_header
      _
    $region3: #{tpu_custom_call.1} parent=1 // loop_header
      %s13 = sphi 0, %s17
      %p14 = scmp.ge.s32.totalorder %s13, 4
      %s20 = sphi 0, %s32
      %s21 = sphi 0, %s28
      %s22 = sphi 0, %s20
      %s23 = sphi 0, %s21
      %s24 = sphi 0, %s22
      %s25 = sphi 0, %s23
      %s37 = sphi 0, %s39
      %s40 = sphi 0, %s37
      %s41 = sphi 0, %s40
      %s57 = sphi 0, %s41
      %s65 = sphi 0, %s67
      %s68 = sphi 0, %s65
      %s69 = sphi 0, %s68
      %s85 = sphi 0, %s69
    $region4: #{tpu_custom_call.1} parent=1 // loop_header_branch
      %16 = sbr.rel (%p14) target = $region8
    $region5: #{tpu_custom_call.1} parent=1 // loop_body
      %s18 = ssub.s32 %s13, 1
      %s19 = ssub.s32 %s13, 2
      %s26 = sadd.s32 1, %s21
      %p27 = scmp.ge.s32.totalorder %s26, 1
      %s28 = scalar_select %p27, 0, %s26
      %s29 = sadd.s32 1, %s20
      %s30 = scalar_select %p27, %s29, %s20
      %p31 = scmp.ge.s32.totalorder %s30, 2
      %s32 = scalar_select %p31, 0, %s30
      %s33 = ssub.s32 %s20, %s32
      %s34 = ssub.s32 %s21, %s28
      %s35 = sor.u32 %s33, %s34
      %p36 = scmp.eq.s32.totalorder %s35, 0
      %s38 = sadd.s32 %s37, 1
      %s39 = scalar_select %p36, %s37, %s38
      %p42 = pneg %p36
      %p43 = scmp.eq.s32.totalorder %s13, 1
      %p44 = por %p42, %p43
      %p45 = scmp.ne.s32.totalorder %s37, %s40
      %p46 = scmp.eq.s32.totalorder %s13, 0
      %p47 = por %p45, %p46
      %p48 = scmp.ne.s32.totalorder %s37, %s40
      %p49 = scmp.eq.s32.totalorder %s18, 1
      %p50 = por %p48, %p49
      %p51 = scmp.ne.s32.totalorder %s40, %s41
      %p52 = scmp.eq.s32.totalorder %s18, 0
      %p53 = por %p51, %p52
      %p54 = scmp.ne.s32.totalorder %s40, %s41
      %p55 = scmp.eq.s32.totalorder %s19, 1
      %p56 = por %p54, %p55
      %p58 = scmp.ne.s32.totalorder %s41, %s57
      %p59 = scmp.eq.s32.totalorder %s19, 0
      %p60 = por %p58, %p59
      %s61 = ssub.s32 %s20, %s32
      %s62 = ssub.s32 %s21, %s28
      %s63 = sor.u32 %s61, %s62
      %p64 = scmp.eq.s32.totalorder %s63, 0
      %s66 = sadd.s32 %s65, 1
      %s67 = scalar_select %p64, %s65, %s66
      %p70 = pneg %p64
      %p71 = scmp.eq.s32.totalorder %s13, 1
      %p72 = por %p70, %p71
      %p73 = scmp.ne.s32.totalorder %s65, %s68
      %p74 = scmp.eq.s32.totalorder %s13, 0
      %p75 = por %p73, %p74
      %p76 = scmp.ne.s32.totalorder %s65, %s68
      %p77 = scmp.eq.s32.totalorder %s18, 1
      %p78 = por %p76, %p77
      %p79 = scmp.ne.s32.totalorder %s68, %s69
      %p80 = scmp.eq.s32.totalorder %s18, 0
      %p81 = por %p79, %p80
      %p82 = scmp.ne.s32.totalorder %s68, %s69
      %p83 = scmp.eq.s32.totalorder %s19, 1
      %p84 = por %p82, %p83
      %p86 = scmp.ne.s32.totalorder %s69, %s85
      %p87 = scmp.eq.s32.totalorder %s19, 0
      %p88 = por %p86, %p87
      %p89 = scmp.le.s32.totalorder 1, %s13
      %p90 = scmp.lt.s32.totalorder %s13, 3
      %p91 = pnand %p89, %p90
      %p92 = pneg %p91
      // Predicated region
      $region9: #{tpu_custom_call.1} parent=5 // pred_check
        _
      $region10: #{tpu_custom_call.1} parent=5 // pred_check_branch
        %94 = sbr.rel (%p91) target = $region12
      $region11: #{tpu_custom_call.1} parent=5 // pred_region
        %s95 = ssub.s32 %s13, 1
      $region12: #{tpu_custom_call.1} parent=5 // pred_fallthru
        _
      %p96 = scmp.lt.s32.totalorder %s13, 2
      // Predicated region
      $region13: #{tpu_custom_call.1} parent=5 // pred_check
        %p97 = pneg %p96
      $region14: #{tpu_custom_call.1} parent=5 // pred_check_branch
        %99 = sbr.rel (%p97) target = $region16
      $region15: #{tpu_custom_call.1} parent=5 // pred_region
        // Predicated region
        $region17: #{tpu_custom_call.1} parent=15 // pred_check
          %p100 = pneg %p47
        $region18: #{tpu_custom_call.1} parent=15 // pred_check_branch
          %102 = sbr.rel (%p100) target = $region20
        $region19: #{tpu_custom_call.1} parent=15 // pred_region
          %s103 = sand.u32 %s37, 1
          %s104 = scalar_lea.sflag [#allocation3], %s103
          %s105 = sand.u32 %s37, 1
          %s106 = smul.addr %s105, 16
          %s107 = scalar_lea.vmem [#allocation2], %s106
          %s108 = smul.u32 2, %s21
          %s110 = ssub.s32 256, 256
          %111 = vsyncadd %s104, %s110
          %s112 = smul.addr %s20, 2
          %s113 = sadd.s32 %s108, %s112
          %s114 = smul.addr %s113, 128
          %s115 = scalar_lea.hbm %s0, %s114
          %s116 = sshll.u32 %s107, 4
          %s117 = int_to_ptr.vmem [resolvable:$true] %s116
          %122 = dma.hbm_to_vmem [thread:$0]  %s115, 256, %s117, %s104, 128, 128, 8
        $region20: #{tpu_custom_call.1} parent=15 // pred_fallthru
          _
      $region16: #{tpu_custom_call.1} parent=5 // pred_fallthru
        _
      %p123 = scmp.le.s32.totalorder 1, %s13
      %p124 = scmp.lt.s32.totalorder %s13, 3
      %p125 = pnand %p123, %p124
      %p126 = pneg %p125
      // Predicated region
      $region21: #{tpu_custom_call.1} parent=5 // pred_check
        _
      $region22: #{tpu_custom_call.1} parent=5 // pred_check_branch
        %128 = sbr.rel (%p125) target = $region24
      $region23: #{tpu_custom_call.1} parent=5 // pred_region
        %s129 = ssub.s32 %s13, 1
        %s130 = sand.u32 %s40, 1
        %s131 = scalar_lea.sflag [#allocation3], %s130
        %s132 = sand.u32 %s40, 1
        %s133 = smul.addr %s132, 16
        %s134 = scalar_lea.vmem [#allocation2], %s133
        // Predicated region
        $region25: #{tpu_custom_call.1} parent=23 // pred_check
          %p135 = pneg %p53
        $region26: #{tpu_custom_call.1} parent=23 // pred_check_branch
          %137 = sbr.rel (%p135) target = $region28
        $region27: #{tpu_custom_call.1} parent=23 // pred_region
          %138 = dma.done %s131, 256
        $region28: #{tpu_custom_call.1} parent=23 // pred_fallthru
          _
        %s139 = sand.u32 %s40, 1
        %s140 = scalar_lea.sflag [#allocation3], %s139
        %s141 = sand.u32 %s40, 1
        %s142 = smul.addr %s141, 16
        %s143 = scalar_lea.vmem [#allocation2], %s142
        %p144 = pneg %p53
        %p145 = pneg %p50
        %p146 = pneg %p81
        %p147 = pneg %p78
        %s148 = sand.u32 %s68, 1
        %s149 = scalar_lea.sflag [#allocation4], %s148
        %s150 = sand.u32 %s68, 1
        %s151 = smul.addr %s150, 8
        %s152 = scalar_lea.vmem [#allocation5], %s151
        %s153 = smul.u32 2, %s23
        %v154 = vld [vmem:[%s134] ss:$2 sm:$0xff]
        %vm155 = vcmask 261120
        %156 = vst.msk [vmem:[%s152] sm:$0xff] %vm155, %v154
        %s157 = sand.u32 %s68, 1
        %s158 = scalar_lea.sflag [#allocation4], %s157
        %s159 = sand.u32 %s68, 1
        %s160 = smul.addr %s159, 8
        %s161 = scalar_lea.vmem [#allocation5], %s160
        // Predicated region
        $region29: #{tpu_custom_call.1} parent=23 // pred_check
          %p162 = pneg %p78
        $region30: #{tpu_custom_call.1} parent=23 // pred_check_branch
          %164 = sbr.rel (%p162) target = $region32
        $region31: #{tpu_custom_call.1} parent=23 // pred_region
          %s166 = ssub.s32 128, 128
          %167 = vsyncadd %s158, %s166
          %s168 = sadd.s32 %s23, %s22
          %s169 = smul.addr %s168, 128
          %s170 = scalar_lea.hbm %s1, %s169
          %s172 = sshll.u32 %s161, 4
          %s173 = int_to_ptr.vmem [resolvable:$true] %s172
          %175 = dma.vmem_to_hbm [thread:$0]  %s173, 128, %s170, %s158
        $region32: #{tpu_custom_call.1} parent=23 // pred_fallthru
          _
      $region24: #{tpu_custom_call.1} parent=5 // pred_fallthru
        _
      %p176 = scmp.le.s32.totalorder 2, %s13
      // Predicated region
      $region33: #{tpu_custom_call.1} parent=5 // pred_check
        %p177 = pneg %p176
      $region34: #{tpu_custom_call.1} parent=5 // pred_check_branch
        %179 = sbr.rel (%p177) target = $region36
      $region35: #{tpu_custom_call.1} parent=5 // pred_region
        %s180 = ssub.s32 %s13, 2
        // Predicated region
        $region37: #{tpu_custom_call.1} parent=35 // pred_check
          %p181 = pneg %p84
        $region38: #{tpu_custom_call.1} parent=35 // pred_check_branch
          %183 = sbr.rel (%p181) target = $region40
        $region39: #{tpu_custom_call.1} parent=35 // pred_region
          %s184 = sand.u32 %s69, 1
          %s185 = scalar_lea.sflag [#allocation4], %s184
          %s186 = sand.u32 %s69, 1
          %s187 = smul.addr %s186, 8
          %s188 = scalar_lea.vmem [#allocation5], %s187
          %189 = dma.done %s185, 128
        $region40: #{tpu_custom_call.1} parent=35 // pred_fallthru
          _
      $region36: #{tpu_custom_call.1} parent=5 // pred_fallthru
        _
    $region6: #{tpu_custom_call.1} parent=1 // loop_footer
      %s17 = sadd.s32 1, %s13
    $region7: #{tpu_custom_call.1} parent=1 // loop_footer_branch
      %12 = sbr.rel target = $region3
    $region8: #{tpu_custom_call.1} parent=1 // loop_exit
      _
    %190 = vsyncpa [#allocation3], 1
    %s191 = scalar_lea.sflag [#allocation3], 1
    %192 = vsyncpa %s191, 1
    %193 = vsyncpa [#allocation4], 1
    %s194 = scalar_lea.sflag [#allocation4], 1
    %195 = vsyncpa %s194, 1

</llo_original>
